<compile_context>
chip_gen: v5e
topology: v5e:2x2
jax: 0.10.0
libtpu: 0.0.40
codegen_flags: <defaults>
</compile_context>

<pallas_src>
import math

import jax
import jax.numpy as jnp
from jax.experimental import pallas as pl
from jax.experimental.pallas import tpu as pltpu


def _round_up(x, m):
    return ((x + m - 1) // m) * m


def parser_mlp_kernel(x_ref, w1_ref, b1_ref, w2_ref, b2_ref, out_ref):
    # hidden = relu(x @ W1 + b1), f32 accumulator / f32 epilogue
    h = jnp.dot(x_ref[...], w1_ref[...], preferred_element_type=jnp.float32)
    h = jnp.maximum(h + b1_ref[...], 0.0)
    # TODO(synk): dropout is identity at inference; training-mode dropout would need
    # pltpu.prng_seed / pltpu.prng_random_bits masking here.
    # logits = hidden @ W2 + b2  (hidden re-cast to bf16 for the MXU, accumulate in f32)
    logits = jnp.dot(h.astype(w2_ref.dtype), w2_ref[...],
                     preferred_element_type=jnp.float32)
    out_ref[...] = logits + b2_ref[...]


def prepare_params(embeddings, w1, b1, w2, b2, *, lane=128):
    """One-time param prep: zero-pad hidden/class dims to lane multiples, cast to bf16.

    Padded W1 columns / b1 entries are zero -> padded hidden units are relu(0)=0;
    padded W2 rows/columns and b2 entries are zero -> padded logits are sliced off,
    so the un-padded logits are bit-for-bit unaffected by the padding.
    """
    in_dim, hidden = w1.shape
    _, n_classes = w2.shape
    in_dim_p = _round_up(in_dim, lane)
    hp = _round_up(hidden, lane)
    cp = _round_up(n_classes, lane)

    w1p = jnp.zeros((in_dim_p, hp), jnp.bfloat16).at[:in_dim, :hidden].set(
        w1.astype(jnp.bfloat16))
    b1p = jnp.zeros((1, hp), jnp.float32).at[:, :hidden].set(b1.astype(jnp.float32))
    w2p = jnp.zeros((hp, cp), jnp.bfloat16).at[:hidden, :n_classes].set(
        w2.astype(jnp.bfloat16))
    b2p = jnp.zeros((1, cp), jnp.float32).at[:, :n_classes].set(b2.astype(jnp.float32))
    emb = embeddings.astype(jnp.bfloat16)
    return emb, w1p, b1p, w2p, b2p


def parser_forward(t_idx, emb_bf16, w1p, b1p, w2p, b2p, n_classes, *, block_b=256):
    """Full ParserModel forward. Gather/flatten in JAX, fused (matmul+ReLU+matmul) in Pallas.

    block_b: batch tile. Default 256 keeps VMEM use far under the v7x 32 MiB scoped
    default while presenting MXU-native (256-row) LHS tiles on v6e/v7x; it is clamped
    down for small batches. The batch axis is "parallel" so v7x's two TensorCores
    each take half the tiles.
    """
    B, n_features = t_idx.shape
    embed_size = emb_bf16.shape[1]
    in_dim = n_features * embed_size
    in_dim_p, hp = w1p.shape
    _, cp = w2p.shape

    # Embedding gather + flatten (glue). Gather result is already bf16 -> half the HBM
    # traffic of the old f32 path; no extra .astype pass.
    # TODO(synk): fuse the gather into the kernel (scalar-prefetched t_idx + per-row DMA
    # from an HBM-resident `memory_space=pl.ANY` embedding table) to avoid materializing
    # x in HBM entirely at large batch sizes.
    x = jnp.take(emb_bf16, t_idx, axis=0).reshape(B, in_dim)
    if in_dim_p != in_dim:
        x = jnp.pad(x, ((0, 0), (0, in_dim_p - in_dim)))

    # Clamp/align the batch tile and pad the batch to a tile multiple.
    block_b = _round_up(max(8, min(block_b, _round_up(B, 8))), 8)
    b_pad = _round_up(B, block_b)
    if b_pad != B:
        x = jnp.pad(x, ((0, b_pad - B), (0, 0)))

    grid = (b_pad // block_b,)
    flops = 2 * b_pad * in_dim_p * hp + 2 * b_pad * hp * cp
    bytes_accessed = (x.size * x.dtype.itemsize
                      + w1p.size * 2 + w2p.size * 2
                      + b1p.size * 4 + b2p.size * 4
                      + b_pad * cp * 4)

    out = pl.pallas_call(
        parser_mlp_kernel,
        out_shape=jax.ShapeDtypeStruct((b_pad, cp), jnp.float32),
        grid_spec=pltpu.PrefetchScalarGridSpec(
            num_scalar_prefetch=0,
            grid=grid,
            in_specs=[
                pl.BlockSpec((block_b, in_dim_p), lambda i: (i, 0)),   # x tile (pipelined)
                pl.BlockSpec((in_dim_p, hp), lambda i: (0, 0)),        # W1 (VMEM-resident)
                pl.BlockSpec((1, hp), lambda i: (0, 0)),               # b1
                pl.BlockSpec((hp, cp), lambda i: (0, 0)),              # W2
                pl.BlockSpec((1, cp), lambda i: (0, 0)),               # b2
            ],
            out_specs=pl.BlockSpec((block_b, cp), lambda i: (i, 0)),   # lane-dense store
        ),
        compiler_params=pltpu.CompilerParams(
            dimension_semantics=("parallel",),
        ),
        cost_estimate=pl.CostEstimate(
            flops=flops, transcendentals=0, bytes_accessed=bytes_accessed),
    )(x, w1p, b1p, w2p, b2p)

    # Strip batch + class padding.
    return out[:B, :n_classes]


def xavier_uniform(key, fan_out, fan_in):
    # matches torch.nn.init.xavier_uniform_ for a (fan_out, fan_in) weight
    bound = math.sqrt(6.0 / (fan_in + fan_out))
    return jax.random.uniform(key, (fan_out, fan_in), jnp.float32, -bound, bound)


if __name__ == "__main__":
    # Small, deterministic config consistent with the module's __init__/forward.
    vocab_size = 100
    embed_size = 16
    n_features = 8          # args['n_features']
    hidden_size = 64        # args['hidden_size']
    n_classes = 16          # args['n_classes']
    batch = 48
    in_dim = n_features * embed_size

    key = jax.random.PRNGKey(0)
    k_emb, k_w1, k_b1, k_w2, k_b2, k_idx = jax.random.split(key, 6)

    # pretrained embeddings (would come from `embeddings` arg)
    embeddings = jax.random.normal(k_emb, (vocab_size, embed_size), jnp.float32)

    # embed_to_hidden: Linear(in_dim, hidden_size), xavier_uniform weight, default bias
    w1_torch = xavier_uniform(k_w1, hidden_size, in_dim)          # (out, in)
    b1 = jax.random.uniform(k_b1, (1, hidden_size), jnp.float32,
                            -1.0 / math.sqrt(in_dim), 1.0 / math.sqrt(in_dim))
    # hidden_to_logits: Linear(hidden_size, n_classes)
    w2_torch = xavier_uniform(k_w2, n_classes, hidden_size)       # (out, in)
    b2 = jax.random.uniform(k_b2, (1, n_classes), jnp.float32,
                            -1.0 / math.sqrt(hidden_size), 1.0 / math.sqrt(hidden_size))

    # Pre-transpose to (in, out) so the kernel computes x @ W directly.
    w1 = w1_torch.T
    w2 = w2_torch.T

    # One-time parameter prep: lane-dense zero padding + bf16 cast.
    emb_bf16, w1p, b1p, w2p, b2p = prepare_params(embeddings, w1, b1, w2, b2)

    # Token-index input: (batch, n_features) int32
    t_idx = jax.random.randint(k_idx, (batch, n_features), 0, vocab_size, jnp.int32)

    # block_b=16 here just to exercise a multi-tile (grid=(3,)) parallel batch axis
    # at this toy batch; real deployments use the default 256.
    logits = parser_forward(t_idx, emb_bf16, w1p, b1p, w2p, b2p, n_classes, block_b=16)
    jax.block_until_ready(logits)

    # Reference in plain JAX with the same bf16 inputs / f32 accumulation
    # (dropout is identity at inference).
    x_ref = jnp.take(emb_bf16, t_idx, axis=0).reshape(batch, in_dim)
    h_ref = jnp.maximum(
        jnp.dot(x_ref, w1.astype(jnp.bfloat16), preferred_element_type=jnp.float32) + b1,
        0.0)
    logits_ref = jnp.dot(h_ref.astype(jnp.bfloat16), w2.astype(jnp.bfloat16),
                         preferred_element_type=jnp.float32) + b2
    assert logits.shape == (batch, n_classes)
    assert jnp.allclose(logits, logits_ref, atol=2e-2, rtol=2e-2)

    print("KERNEL_OK")
</pallas_src>

<mosaic_0001>
module attributes {stable_mosaic.version = 11 : i64} {
  func.func @parser_mlp_kernel(%arg0: i32, %arg1: memref<16x128xbf16, #tpu.memory_space<vmem>>, %arg2: memref<128x128xbf16, #tpu.memory_space<vmem>>, %arg3: memref<1x128xf32, #tpu.memory_space<vmem>>, %arg4: memref<128x128xbf16, #tpu.memory_space<vmem>>, %arg5: memref<1x128xf32, #tpu.memory_space<vmem>>, %arg6: memref<16x128xf32, #tpu.memory_space<vmem>>) attributes {dimension_semantics = [#tpu.dimension_semantics<parallel>], iteration_bounds = array<i64: 3>, scalar_prefetch = 0 : i64, scratch_operands = 0 : i64, tpu.core_type = #tpu.core_type<tc>, window_params = [{transform_indices = @transform_0, window_bounds = array<i64: 16, 128>}, {pipeline_mode = #tpu.pipeline_mode<synchronous>, transform_indices = @transform_1, window_bounds = array<i64: 128, 128>}, {pipeline_mode = #tpu.pipeline_mode<synchronous>, transform_indices = @transform_2, window_bounds = array<i64: 1, 128>}, {pipeline_mode = #tpu.pipeline_mode<synchronous>, transform_indices = @transform_3, window_bounds = array<i64: 128, 128>}, {pipeline_mode = #tpu.pipeline_mode<synchronous>, transform_indices = @transform_4, window_bounds = array<i64: 1, 128>}, {transform_indices = @transform_5, window_bounds = array<i64: 16, 128>}]} {
    %c0 = arith.constant 0 : index
    %c0_0 = arith.constant 0 : index
    %0 = vector.load %arg1[%c0, %c0_0] : memref<16x128xbf16, #tpu.memory_space<vmem>>, vector<16x128xbf16>
    %c0_1 = arith.constant 0 : index
    %c0_2 = arith.constant 0 : index
    %1 = vector.load %arg2[%c0_1, %c0_2] : memref<128x128xbf16, #tpu.memory_space<vmem>>, vector<128x128xbf16>
    %cst = arith.constant dense<0.000000e+00> : vector<16x128xf32>
    %2 = tpu.matmul %0, %1, %cst {dimension_numbers = #tpu.dot_dimension_numbers<[1], [0], [0], [1], [0, 0, 1, 1], [], []>} : vector<16x128xbf16>, vector<128x128xbf16>, vector<16x128xf32> -> vector<16x128xf32>
    %c0_3 = arith.constant 0 : index
    %c0_4 = arith.constant 0 : index
    %3 = vector.load %arg3[%c0_3, %c0_4] : memref<1x128xf32, #tpu.memory_space<vmem>>, vector<1x128xf32>
    %4 = vector.broadcast %3 : vector<1x128xf32> to vector<16x128xf32>
    %5 = arith.addf %2, %4 : vector<16x128xf32>
    %cst_5 = arith.constant 0.000000e+00 : f32
    %6 = vector.broadcast %cst_5 : f32 to vector<16x128xf32>
    %7 = arith.maximumf %5, %6 : vector<16x128xf32>
    %8 = arith.truncf %7 : vector<16x128xf32> to vector<16x128xbf16>
    %c0_6 = arith.constant 0 : index
    %c0_7 = arith.constant 0 : index
    %9 = vector.load %arg4[%c0_6, %c0_7] : memref<128x128xbf16, #tpu.memory_space<vmem>>, vector<128x128xbf16>
    %cst_8 = arith.constant dense<0.000000e+00> : vector<16x128xf32>
    %10 = tpu.matmul %8, %9, %cst_8 {dimension_numbers = #tpu.dot_dimension_numbers<[1], [0], [0], [1], [0, 0, 1, 1], [], []>} : vector<16x128xbf16>, vector<128x128xbf16>, vector<16x128xf32> -> vector<16x128xf32>
    %c0_9 = arith.constant 0 : index
    %c0_10 = arith.constant 0 : index
    %11 = vector.load %arg5[%c0_9, %c0_10] : memref<1x128xf32, #tpu.memory_space<vmem>>, vector<1x128xf32>
    %12 = vector.broadcast %11 : vector<1x128xf32> to vector<16x128xf32>
    %13 = arith.addf %10, %12 : vector<16x128xf32>
    %c0_11 = arith.constant 0 : index
    %c0_12 = arith.constant 0 : index
    %14 = vector.load %arg6[%c0_11, %c0_12] : memref<16x128xf32, #tpu.memory_space<vmem>>, vector<16x128xf32>
    tpu.vector_store %arg6[%c0_11, %c0_12], %13 {strides = array<i32>} : memref<16x128xf32, #tpu.memory_space<vmem>>, vector<16x128xf32>,
    return
  }
  func.func @transform_0(%arg0: i32) -> (i32, i32) {
    %c0_i32 = arith.constant 0 : i32
    %c0_i32_0 = arith.constant 0 : i32
    return %arg0, %c0_i32 : i32, i32
  }
  func.func @transform_1(%arg0: i32) -> (i32, i32) {
    %c0_i32 = arith.constant 0 : i32
    %c0_i32_0 = arith.constant 0 : i32
    %c0_i32_1 = arith.constant 0 : i32
    return %c0_i32, %c0_i32_0 : i32, i32
  }
  func.func @transform_2(%arg0: i32) -> (i32, i32) {
    %c0_i32 = arith.constant 0 : i32
    %c0_i32_0 = arith.constant 0 : i32
    %c0_i32_1 = arith.constant 0 : i32
    return %c0_i32, %c0_i32_0 : i32, i32
  }
  func.func @transform_3(%arg0: i32) -> (i32, i32) {
    %c0_i32 = arith.constant 0 : i32
    %c0_i32_0 = arith.constant 0 : i32
    %c0_i32_1 = arith.constant 0 : i32
    return %c0_i32, %c0_i32_0 : i32, i32
  }
  func.func @transform_4(%arg0: i32) -> (i32, i32) {
    %c0_i32 = arith.constant 0 : i32
    %c0_i32_0 = arith.constant 0 : i32
    %c0_i32_1 = arith.constant 0 : i32
    return %c0_i32, %c0_i32_0 : i32, i32
  }
  func.func @transform_5(%arg0: i32) -> (i32, i32) {
    %c0_i32 = arith.constant 0 : i32
    %c0_i32_0 = arith.constant 0 : i32
    return %arg0, %c0_i32 : i32, i32
  }
}

</mosaic_0001>

<llo_original>
// kernel: tpu_custom_call.1
$region0: #{tpu_custom_call.1}
  #allocation0 [shape = 'u32[]', space=smem, size = 0x4, offset = 0x4, fixed_abs, tag = 'smem constant byte address 0x4 - core index']
  #allocation1 [shape = 'u32[72,128]{1,0:T(1,128)}', space=vmem, size = 0x9000, scoped, tag = 'internal scratch']
  %s0 = inlined_call_operand.hbm [shape: bf16[48,128], index: 0, kind: input, shape index: {}]
  %s1 = inlined_call_operand.hbm [shape: bf16[128,128], index: 1, kind: input, shape index: {}]
  %s2 = inlined_call_operand.vmem [shape: f32[1,128], index: 2, kind: input, shape index: {}]
  %s3 = inlined_call_operand.hbm [shape: bf16[128,128], index: 3, kind: input, shape index: {}]
  %s4 = inlined_call_operand.vmem [shape: f32[1,128], index: 4, kind: input, shape index: {}]
  %s5 = inlined_call_operand.hbm [shape: f32[48,128], index: 5, kind: output, shape index: {}]
  %s6 = sld [smem:[#allocation0]]
  $region65: #{tpu_custom_call.1} parent=0
    _
  %s8 = ssub.s32 1, %s6
  %s9 = scalar_select 0, %s8, %s6
  $region1: #{tpu_custom_call.1} parent=0
    #allocation2 [shape = 'u8[8192]{0}', space=vmem, size = 0x2000, scoped, tag = 'input window, operand 0']
    #allocation3 [shape = 's32[2]{0}', space=sflag, size = 0x8, scoped, tag = 'scoped memory for tpu_custom_call.1']
    #allocation4 [shape = 's32[2]{0}', space=sflag, size = 0x8, scoped, tag = 'scoped memory for tpu_custom_call.1']
    #allocation5 [shape = 'u8[32768]{0}', space=vmem, size = 0x8000, scoped, tag = 'input window, operand 1, single buffered']
    #allocation6 [shape = 's32[1]{0}', space=sflag, size = 0x4, scoped, tag = 'scoped memory for tpu_custom_call.1']
    #allocation7 [shape = 'u8[32768]{0}', space=vmem, size = 0x8000, scoped, tag = 'input window, operand 3, single buffered']
    #allocation8 [shape = 'u8[16384]{0}', space=vmem, size = 0x4000, scoped, tag = 'output window, operand 0']
    %10 = vsyncpa [#allocation3], 0
    %s11 = scalar_lea.sflag [#allocation3], 1
    %12 = vsyncpa %s11, 0
    %13 = vsyncpa [#allocation6], 0
    %14 = vsyncpa [#allocation4], 0
    %s15 = scalar_lea.sflag [#allocation4], 1
    %16 = vsyncpa %s15, 0
    loop: start=0, step=1, limit=5
    $region2: #{tpu_custom_call.1} parent=1 // loop_pre_header
      _
    $region3: #{tpu_custom_call.1} parent=1 // loop_header
      %s18 = sphi 0, %s22
      %p19 = scmp.ge.s32.totalorder %s18, 5
      %s28 = sphi 0, %s30
      %s31 = sphi 0, %s28
      %s32 = sphi 0, %s31
      %s48 = sphi 0, %s32
      %s52 = sphi 0, %s52
      %s54 = sphi 0, %s52
      %s55 = sphi 0, %s54
      %s69 = sphi 0, %s55
      %s73 = sphi 0, %s73
      %s75 = sphi 0, %s73
      %s76 = sphi 0, %s75
      %s90 = sphi 0, %s76
      %s94 = sphi 0, %s94
      %s96 = sphi 0, %s94
      %s97 = sphi 0, %s96
      %s111 = sphi 0, %s97
      %s115 = sphi 0, %s115
      %s117 = sphi 0, %s115
      %s118 = sphi 0, %s117
      %s132 = sphi 0, %s118
      %s138 = sphi 0, %s140
      %s141 = sphi 0, %s138
      %s142 = sphi 0, %s141
      %s158 = sphi 0, %s142
    $region4: #{tpu_custom_call.1} parent=1 // loop_header_branch
      %21 = sbr.rel (%p19) target = $region8
    $region5: #{tpu_custom_call.1} parent=1 // loop_body
      %s23 = ssub.s32 %s18, 1
      %s24 = ssub.s32 %s18, 2
      %s25 = sadd.s32 %s18, 1
      %s26 = ssub.s32 %s18, %s25
      %p27 = scmp.eq.s32.totalorder %s26, 0
      %s29 = sadd.s32 %s28, 1
      %s30 = scalar_select %p27, %s28, %s29
      %p33 = pneg %p27
      %p34 = scmp.eq.s32.totalorder %s18, 2
      %p35 = por %p33, %p34
      %p36 = scmp.ne.s32.totalorder %s28, %s31
      %p37 = scmp.eq.s32.totalorder %s18, 0
      %p38 = por %p36, %p37
      %p39 = scmp.ne.s32.totalorder %s28, %s31
      %p40 = scmp.eq.s32.totalorder %s23, 2
      %p41 = por %p39, %p40
      %p42 = scmp.ne.s32.totalorder %s31, %s32
      %p43 = scmp.eq.s32.totalorder %s23, 0
      %p44 = por %p42, %p43
      %p45 = scmp.ne.s32.totalorder %s31, %s32
      %p46 = scmp.eq.s32.totalorder %s24, 2
      %p47 = por %p45, %p46
      %p49 = scmp.ne.s32.totalorder %s32, %s48
      %p50 = scmp.eq.s32.totalorder %s24, 0
      %p51 = por %p49, %p50
      %s53 = sadd.s32 %s52, 1
      %p56 = scmp.eq.s32.totalorder %s18, 2
      %p57 = scmp.ne.s32.totalorder %s52, %s54
      %p58 = scmp.eq.s32.totalorder %s18, 0
      %p59 = por %p57, %p58
      %p60 = scmp.ne.s32.totalorder %s52, %s54
      %p61 = scmp.eq.s32.totalorder %s23, 2
      %p62 = por %p60, %p61
      %p63 = scmp.ne.s32.totalorder %s54, %s55
      %p64 = scmp.eq.s32.totalorder %s23, 0
      %p65 = por %p63, %p64
      %p66 = scmp.ne.s32.totalorder %s54, %s55
      %p67 = scmp.eq.s32.totalorder %s24, 2
      %p68 = por %p66, %p67
      %p70 = scmp.ne.s32.totalorder %s55, %s69
      %p71 = scmp.eq.s32.totalorder %s24, 0
      %p72 = por %p70, %p71
      %s74 = sadd.s32 %s73, 1
      %p77 = scmp.eq.s32.totalorder %s18, 2
      %p78 = scmp.ne.s32.totalorder %s73, %s75
      %p79 = scmp.eq.s32.totalorder %s18, 0
      %p80 = por %p78, %p79
      %p81 = scmp.ne.s32.totalorder %s73, %s75
      %p82 = scmp.eq.s32.totalorder %s23, 2
      %p83 = por %p81, %p82
      %p84 = scmp.ne.s32.totalorder %s75, %s76
      %p85 = scmp.eq.s32.totalorder %s23, 0
      %p86 = por %p84, %p85
      %p87 = scmp.ne.s32.totalorder %s75, %s76
      %p88 = scmp.eq.s32.totalorder %s24, 2
      %p89 = por %p87, %p88
      %p91 = scmp.ne.s32.totalorder %s76, %s90
      %p92 = scmp.eq.s32.totalorder %s24, 0
      %p93 = por %p91, %p92
      %s95 = sadd.s32 %s94, 1
      %p98 = scmp.eq.s32.totalorder %s18, 2
      %p99 = scmp.ne.s32.totalorder %s94, %s96
      %p100 = scmp.eq.s32.totalorder %s18, 0
      %p101 = por %p99, %p100
      %p102 = scmp.ne.s32.totalorder %s94, %s96
      %p103 = scmp.eq.s32.totalorder %s23, 2
      %p104 = por %p102, %p103
      %p105 = scmp.ne.s32.totalorder %s96, %s97
      %p106 = scmp.eq.s32.totalorder %s23, 0
      %p107 = por %p105, %p106
      %p108 = scmp.ne.s32.totalorder %s96, %s97
      %p109 = scmp.eq.s32.totalorder %s24, 2
      %p110 = por %p108, %p109
      %p112 = scmp.ne.s32.totalorder %s97, %s111
      %p113 = scmp.eq.s32.totalorder %s24, 0
      %p114 = por %p112, %p113
      %s116 = sadd.s32 %s115, 1
      %p119 = scmp.eq.s32.totalorder %s18, 2
      %p120 = scmp.ne.s32.totalorder %s115, %s117
      %p121 = scmp.eq.s32.totalorder %s18, 0
      %p122 = por %p120, %p121
      %p123 = scmp.ne.s32.totalorder %s115, %s117
      %p124 = scmp.eq.s32.totalorder %s23, 2
      %p125 = por %p123, %p124
      %p126 = scmp.ne.s32.totalorder %s117, %s118
      %p127 = scmp.eq.s32.totalorder %s23, 0
      %p128 = por %p126, %p127
      %p129 = scmp.ne.s32.totalorder %s117, %s118
      %p130 = scmp.eq.s32.totalorder %s24, 2
      %p131 = por %p129, %p130
      %p133 = scmp.ne.s32.totalorder %s118, %s132
      %p134 = scmp.eq.s32.totalorder %s24, 0
      %p135 = por %p133, %p134
      %s136 = ssub.s32 %s18, %s25
      %p137 = scmp.eq.s32.totalorder %s136, 0
      %s139 = sadd.s32 %s138, 1
      %s140 = scalar_select %p137, %s138, %s139
      %p143 = pneg %p137
      %p144 = scmp.eq.s32.totalorder %s18, 2
      %p145 = por %p143, %p144
      %p146 = scmp.ne.s32.totalorder %s138, %s141
      %p147 = scmp.eq.s32.totalorder %s18, 0
      %p148 = por %p146, %p147
      %p149 = scmp.ne.s32.totalorder %s138, %s141
      %p150 = scmp.eq.s32.totalorder %s23, 2
      %p151 = por %p149, %p150
      %p152 = scmp.ne.s32.totalorder %s141, %s142
      %p153 = scmp.eq.s32.totalorder %s23, 0
      %p154 = por %p152, %p153
      %p155 = scmp.ne.s32.totalorder %s141, %s142
      %p156 = scmp.eq.s32.totalorder %s24, 2
      %p157 = por %p155, %p156
      %p159 = scmp.ne.s32.totalorder %s142, %s158
      %p160 = scmp.eq.s32.totalorder %s24, 0
      %p161 = por %p159, %p160
      %p162 = scmp.le.s32.totalorder 1, %s18
      %p163 = scmp.lt.s32.totalorder %s18, 4
      %p164 = pnand %p162, %p163
      %p165 = pneg %p164
      // Predicated region
      $region9: #{tpu_custom_call.1} parent=5 // pred_check
        _
      $region10: #{tpu_custom_call.1} parent=5 // pred_check_branch
        %167 = sbr.rel (%p164) target = $region12
      $region11: #{tpu_custom_call.1} parent=5 // pred_region
        %s168 = ssub.s32 %s18, 1
        // Predicated region
        $region13: #{tpu_custom_call.1} parent=11 // pred_check
          %p169 = pneg %p65
        $region14: #{tpu_custom_call.1} parent=11 // pred_check_branch
          %171 = sbr.rel (%p169) target = $region16
        $region15: #{tpu_custom_call.1} parent=11 // pred_region
          %173 = vsyncadd [#allocation6], 0
          %s174 = sshll.u32 %s1, 4
          %s175 = int_to_ptr.hbm [resolvable:$true] %s174
          %s176 = sshll.u32 [#allocation5], 4
          %s177 = int_to_ptr.vmem [resolvable:$true] %s176
          %182 = dma.hbm_to_vmem [thread:$0]  %s175, 1024, %s177, [#allocation6], 64, 64, 4
        $region16: #{tpu_custom_call.1} parent=11 // pred_fallthru
          _
        // Predicated region
        $region17: #{tpu_custom_call.1} parent=11 // pred_check
          %p183 = pneg %p86
        $region18: #{tpu_custom_call.1} parent=11 // pred_check_branch
          %185 = sbr.rel (%p183) target = $region20
        $region19: #{tpu_custom_call.1} parent=11 // pred_region
          _
        $region20: #{tpu_custom_call.1} parent=11 // pred_fallthru
          _
        // Predicated region
        $region21: #{tpu_custom_call.1} parent=11 // pred_check
          %p186 = pneg %p107
        $region22: #{tpu_custom_call.1} parent=11 // pred_check_branch
          %188 = sbr.rel (%p186) target = $region24
        $region23: #{tpu_custom_call.1} parent=11 // pred_region
          %190 = vsyncadd [#allocation6], 0
          %s191 = sshll.u32 %s3, 4
          %s192 = int_to_ptr.hbm [resolvable:$true] %s191
          %s193 = sshll.u32 [#allocation7], 4
          %s194 = int_to_ptr.vmem [resolvable:$true] %s193
          %199 = dma.hbm_to_vmem [thread:$0]  %s192, 1024, %s194, [#allocation6], 64, 64, 4
        $region24: #{tpu_custom_call.1} parent=11 // pred_fallthru
          _
        // Predicated region
        $region25: #{tpu_custom_call.1} parent=11 // pred_check
          %p200 = pneg %p128
        $region26: #{tpu_custom_call.1} parent=11 // pred_check_branch
          %202 = sbr.rel (%p200) target = $region28
        $region27: #{tpu_custom_call.1} parent=11 // pred_region
          _
        $region28: #{tpu_custom_call.1} parent=11 // pred_fallthru
          _
      $region12: #{tpu_custom_call.1} parent=5 // pred_fallthru
        _
      %p203 = scmp.lt.s32.totalorder %s18, 3
      // Predicated region
      $region29: #{tpu_custom_call.1} parent=5 // pred_check
        %p204 = pneg %p203
      $region30: #{tpu_custom_call.1} parent=5 // pred_check_branch
        %206 = sbr.rel (%p204) target = $region32
      $region31: #{tpu_custom_call.1} parent=5 // pred_region
        // Predicated region
        $region33: #{tpu_custom_call.1} parent=31 // pred_check
          %p207 = pneg %p38
        $region34: #{tpu_custom_call.1} parent=31 // pred_check_branch
          %209 = sbr.rel (%p207) target = $region36
        $region35: #{tpu_custom_call.1} parent=31 // pred_region
          %s210 = sand.u32 %s28, 1
          %s211 = scalar_lea.sflag [#allocation3], %s210
          %s212 = sand.u32 %s28, 1
          %s213 = smul.addr %s212, 8
          %s214 = scalar_lea.vmem [#allocation2], %s213
          %s215 = smul.u32 2, %s18
          %217 = vsyncadd %s211, 0
          %s218 = smul.addr %s215, 4
          %s219 = scalar_lea.hbm %s0, %s218
          %s220 = sshll.u32 %s219, 4
          %s221 = int_to_ptr.hbm [resolvable:$true] %s220
          %s222 = sshll.u32 %s214, 4
          %s223 = int_to_ptr.vmem [resolvable:$true] %s222
          %228 = dma.hbm_to_vmem [thread:$0]  %s221, 128, %s223, %s211, 64, 64, 4
        $region36: #{tpu_custom_call.1} parent=31 // pred_fallthru
          _
      $region32: #{tpu_custom_call.1} parent=5 // pred_fallthru
        _
      %p229 = scmp.le.s32.totalorder 1, %s18
      %p230 = scmp.lt.s32.totalorder %s18, 4
      %p231 = pnand %p229, %p230
      %p232 = pneg %p231
      // Predicated region
      $region37: #{tpu_custom_call.1} parent=5 // pred_check
        _
      $region38: #{tpu_custom_call.1} parent=5 // pred_check_branch
        %234 = sbr.rel (%p231) target = $region40
      $region39: #{tpu_custom_call.1} parent=5 // pred_region
        %s235 = ssub.s32 %s18, 1
        %s236 = sand.u32 %s31, 1
        %s237 = scalar_lea.sflag [#allocation3], %s236
        %s238 = sand.u32 %s31, 1
        %s239 = smul.addr %s238, 8
        %s240 = scalar_lea.vmem [#allocation2], %s239
        // Predicated region
        $region41: #{tpu_custom_call.1} parent=39 // pred_check
          %p241 = pneg %p44
        $region42: #{tpu_custom_call.1} parent=39 // pred_check_branch
          %243 = sbr.rel (%p241) target = $region44
        $region43: #{tpu_custom_call.1} parent=39 // pred_region
          %245 = dma.done %s237, 128
        $region44: #{tpu_custom_call.1} parent=39 // pred_fallthru
          _
        // Predicated region
        $region45: #{tpu_custom_call.1} parent=39 // pred_check
          %p246 = pneg %p65
        $region46: #{tpu_custom_call.1} parent=39 // pred_check_branch
          %248 = sbr.rel (%p246) target = $region48
        $region47: #{tpu_custom_call.1} parent=39 // pred_region
          %250 = dma.done [#allocation6], 1024
        $region48: #{tpu_custom_call.1} parent=39 // pred_fallthru
          _
        // Predicated region
        $region49: #{tpu_custom_call.1} parent=39 // pred_check
          %p251 = pneg %p107
        $region50: #{tpu_custom_call.1} parent=39 // pred_check_branch
          %253 = sbr.rel (%p251) target = $region52
        $region51: #{tpu_custom_call.1} parent=39 // pred_region
          %255 = dma.done [#allocation6], 1024
        $region52: #{tpu_custom_call.1} parent=39 // pred_fallthru
          _
        %s256 = sand.u32 %s31, 1
        %s257 = scalar_lea.sflag [#allocation3], %s256
        %s258 = sand.u32 %s31, 1
        %s259 = smul.addr %s258, 8
        %s260 = scalar_lea.vmem [#allocation2], %s259
        %p261 = pneg %p44
        %p262 = pneg %p41
        %p263 = pneg %p65
        %p264 = pneg %p62
        %p265 = pneg %p86
        %p266 = pneg %p83
        %p267 = pneg %p107
        %p268 = pneg %p104
        %p269 = pneg %p128
        %p270 = pneg %p125
        %p271 = pneg %p154
        %p272 = pneg %p151
        %s273 = sand.u32 %s141, 1
        %s274 = scalar_lea.sflag [#allocation4], %s273
        %s275 = sand.u32 %s141, 1
        %s276 = smul.addr %s275, 16
        %s277 = scalar_lea.vmem [#allocation8], %s276
        %s278 = smul.u32 2, %s23
        %s279 = smul.u32 2, %s23
        %v280 = vld [vmem:[%s240] sm:$0xf]
        %v281 = vld [vmem:[%s240 + $0x4] sm:$0xf]
        %v282 = vld [vmem:[#allocation5] sm:$0xf]
        %v283 = vld [vmem:[#allocation5 + $0x4] sm:$0xf]
        %v284 = vld [vmem:[#allocation5 + $0x8] sm:$0xf]
        %v285 = vld [vmem:[#allocation5 + $0xc] sm:$0xf]
        %v286 = vld [vmem:[#allocation5 + $0x10] sm:$0xf]
        %v287 = vld [vmem:[#allocation5 + $0x14] sm:$0xf]
        %v288 = vld [vmem:[#allocation5 + $0x18] sm:$0xf]
        %v289 = vld [vmem:[#allocation5 + $0x1c] sm:$0xf]
        %v290 = vld [vmem:[#allocation5 + $0x20] sm:$0xf]
        %v291 = vld [vmem:[#allocation5 + $0x24] sm:$0xf]
        %v292 = vld [vmem:[#allocation5 + $0x28] sm:$0xf]
        %v293 = vld [vmem:[#allocation5 + $0x2c] sm:$0xf]
        %v294 = vld [vmem:[#allocation5 + $0x30] sm:$0xf]
        %v295 = vld [vmem:[#allocation5 + $0x34] sm:$0xf]
        %v296 = vld [vmem:[#allocation5 + $0x38] sm:$0xf]
        %v297 = vld [vmem:[#allocation5 + $0x3c] sm:$0xf]
        %v298 = vld [vmem:[%s2] sm:$0x1]
        %v300 = vperm.slane %v298, 0
        %v304 = vunpack.c.l.b16 %v280
        %v305 = vunpack.c.l.b16 %v281
        %v306 = vpack.c.b16 %v305, %v304
        %v324 = vunpack.c.l.b16 %v282
        %v325 = vunpack.c.l.b16 %v283
        %v326 = vunpack.c.l.b16 %v284
        %v327 = vunpack.c.l.b16 %v285
        %v328 = vunpack.c.l.b16 %v286
        %v329 = vunpack.c.l.b16 %v287
        %v330 = vunpack.c.l.b16 %v288
        %v331 = vunpack.c.l.b16 %v289
        %v332 = vunpack.c.l.b16 %v290
        %v333 = vunpack.c.l.b16 %v291
        %v334 = vunpack.c.l.b16 %v292
        %v335 = vunpack.c.l.b16 %v293
        %v336 = vunpack.c.l.b16 %v294
        %v337 = vunpack.c.l.b16 %v295
        %v338 = vunpack.c.l.b16 %v296
        %v339 = vunpack.c.l.b16 %v297
        %v340 = vpack.c.b16 %v325, %v324
        %v341 = vpack.c.b16 %v327, %v326
        %v342 = vpack.c.b16 %v329, %v328
        %v343 = vpack.c.b16 %v331, %v330
        %v344 = vpack.c.b16 %v333, %v332
        %v345 = vpack.c.b16 %v335, %v334
        %v346 = vpack.c.b16 %v337, %v336
        %v347 = vpack.c.b16 %v339, %v338
        %356 = vmatpush.bf16.msra.mxu0 %v347
        %357 = vmatpush.bf16.msra.mxu0 %v346
        %358 = vmatpush.bf16.msra.mxu0 %v345
        %359 = vmatpush.bf16.msra.mxu0 %v344
        %360 = vmatpush.bf16.msra.mxu0 %v343
        %361 = vmatpush.bf16.msra.mxu0 %v342
        %362 = vmatpush.bf16.msra.mxu0 %v341
        %363 = vmatpush.bf16.msra.mxu0 %v340
        %364 = vmatmul.bf16.gmra.mxu0 %v306
        %v365 = vpop.f32.mrf.mxu0
        %v366 = vadd.f32 %v300, %v365
        %v367 = vpop.f32.mrf.mxu0
        %v368 = vadd.f32 %v300, %v367
        %369 = vdwg.mxu0
        %v370 = vmax.f32 %v366, 0.0
        %v371 = vmax.f32 %v368, 0.0
        %v372 = vpack.c.bf16 %v371, %v370
        %v373 = vld [vmem:[#allocation7] sm:$0xf]
        %v374 = vld [vmem:[#allocation7 + $0x4] sm:$0xf]
        %v375 = vld [vmem:[#allocation7 + $0x8] sm:$0xf]
        %v376 = vld [vmem:[#allocation7 + $0xc] sm:$0xf]
        %v377 = vld [vmem:[#allocation7 + $0x10] sm:$0xf]
        %v378 = vld [vmem:[#allocation7 + $0x14] sm:$0xf]
        %v379 = vld [vmem:[#allocation7 + $0x18] sm:$0xf]
        %v380 = vld [vmem:[#allocation7 + $0x1c] sm:$0xf]
        %v381 = vld [vmem:[#allocation7 + $0x20] sm:$0xf]
        %v382 = vld [vmem:[#allocation7 + $0x24] sm:$0xf]
        %v383 = vld [vmem:[#allocation7 + $0x28] sm:$0xf]
        %v384 = vld [vmem:[#allocation7 + $0x2c] sm:$0xf]
        %v385 = vld [vmem:[#allocation7 + $0x30] sm:$0xf]
        %v386 = vld [vmem:[#allocation7 + $0x34] sm:$0xf]
        %v387 = vld [vmem:[#allocation7 + $0x38] sm:$0xf]
        %v388 = vld [vmem:[#allocation7 + $0x3c] sm:$0xf]
        %v389 = vld [vmem:[%s4] sm:$0x1]
        %v391 = vperm.slane %v389, 0
        %v409 = vunpack.c.l.b16 %v373
        %v410 = vunpack.c.l.b16 %v374
        %v411 = vunpack.c.l.b16 %v375
        %v412 = vunpack.c.l.b16 %v376
        %v413 = vunpack.c.l.b16 %v377
        %v414 = vunpack.c.l.b16 %v378
        %v415 = vunpack.c.l.b16 %v379
        %v416 = vunpack.c.l.b16 %v380
        %v417 = vunpack.c.l.b16 %v381
        %v418 = vunpack.c.l.b16 %v382
        %v419 = vunpack.c.l.b16 %v383
        %v420 = vunpack.c.l.b16 %v384
        %v421 = vunpack.c.l.b16 %v385
        %v422 = vunpack.c.l.b16 %v386
        %v423 = vunpack.c.l.b16 %v387
        %v424 = vunpack.c.l.b16 %v388
        %v425 = vpack.c.b16 %v410, %v409
        %v426 = vpack.c.b16 %v412, %v411
        %v427 = vpack.c.b16 %v414, %v413
        %v428 = vpack.c.b16 %v416, %v415
        %v429 = vpack.c.b16 %v418, %v417
        %v430 = vpack.c.b16 %v420, %v419
        %v431 = vpack.c.b16 %v422, %v421
        %v432 = vpack.c.b16 %v424, %v423
        %441 = vmatpush.bf16.msra.mxu0 %v432
        %442 = vmatpush.bf16.msra.mxu0 %v431
        %443 = vmatpush.bf16.msra.mxu0 %v430
        %444 = vmatpush.bf16.msra.mxu0 %v429
        %445 = vmatpush.bf16.msra.mxu0 %v428
        %446 = vmatpush.bf16.msra.mxu0 %v427
        %447 = vmatpush.bf16.msra.mxu0 %v426
        %448 = vmatpush.bf16.msra.mxu0 %v425
        %449 = vmatmul.bf16.gmra.mxu0 %v372
        %v450 = vpop.f32.mrf.mxu0
        %v451 = vadd.f32 %v391, %v450
        %v452 = vpop.f32.mrf.mxu0
        %v453 = vadd.f32 %v391, %v452
        %454 = vdwg.mxu0
        %455 = vst [vmem:[%s277] sm:$0xff] %v451
        %456 = vst [vmem:[%s277 + $0x8] sm:$0xff] %v453
        %s457 = sand.u32 %s141, 1
        %s458 = scalar_lea.sflag [#allocation4], %s457
        %s459 = sand.u32 %s141, 1
        %s460 = smul.addr %s459, 16
        %s461 = scalar_lea.vmem [#allocation8], %s460
        // Predicated region
        $region53: #{tpu_custom_call.1} parent=39 // pred_check
          %p462 = pneg %p151
        $region54: #{tpu_custom_call.1} parent=39 // pred_check_branch
          %464 = sbr.rel (%p462) target = $region56
        $region55: #{tpu_custom_call.1} parent=39 // pred_region
          %s465 = smul.u32 2, %s23
          %467 = vsyncadd %s458, 0
          %s468 = smul.addr %s465, 8
          %s469 = scalar_lea.hbm %s5, %s468
          %s470 = sshll.u32 %s461, 4
          %s471 = int_to_ptr.vmem [resolvable:$true] %s470
          %s472 = sshll.u32 %s469, 4
          %s473 = int_to_ptr.hbm [resolvable:$true] %s472
          %478 = dma.vmem_to_hbm [thread:$0]  %s471, 256, %s473, %s458, 128, 128, 8
        $region56: #{tpu_custom_call.1} parent=39 // pred_fallthru
          _
      $region40: #{tpu_custom_call.1} parent=5 // pred_fallthru
        _
      %p479 = scmp.le.s32.totalorder 2, %s18
      // Predicated region
      $region57: #{tpu_custom_call.1} parent=5 // pred_check
        %p480 = pneg %p479
      $region58: #{tpu_custom_call.1} parent=5 // pred_check_branch
        %482 = sbr.rel (%p480) target = $region60
      $region59: #{tpu_custom_call.1} parent=5 // pred_region
        %s483 = ssub.s32 %s18, 2
        // Predicated region
        $region61: #{tpu_custom_call.1} parent=59 // pred_check
          %p484 = pneg %p157
        $region62: #{tpu_custom_call.1} parent=59 // pred_check_branch
          %486 = sbr.rel (%p484) target = $region64
        $region63: #{tpu_custom_call.1} parent=59 // pred_region
          %s487 = sand.u32 %s142, 1
          %s488 = scalar_lea.sflag [#allocation4], %s487
          %s489 = sand.u32 %s142, 1
          %s490 = smul.addr %s489, 16
          %s491 = scalar_lea.vmem [#allocation8], %s490
          %493 = dma.done %s488, 256
        $region64: #{tpu_custom_call.1} parent=59 // pred_fallthru
          _
      $region60: #{tpu_custom_call.1} parent=5 // pred_fallthru
        _
    $region6: #{tpu_custom_call.1} parent=1 // loop_footer
      %s22 = sadd.s32 1, %s18
    $region7: #{tpu_custom_call.1} parent=1 // loop_footer_branch
      %17 = sbr.rel target = $region3
    $region8: #{tpu_custom_call.1} parent=1 // loop_exit
      _
    %494 = vsyncpa [#allocation3], 1
    %s495 = scalar_lea.sflag [#allocation3], 1
    %496 = vsyncpa %s495, 1
    %497 = vsyncpa [#allocation6], 1
    %498 = vsyncpa [#allocation4], 1
    %s499 = scalar_lea.sflag [#allocation4], 1
    %500 = vsyncpa %s499, 1

</llo_original>
